<compile_context>
chip_gen: v5e
topology: v5e:2x2
jax: 0.10.0
libtpu: 0.0.40
codegen_flags: <defaults>
</compile_context>

<pallas_src>
import math

import jax
import jax.numpy as jnp
from jax.experimental import pallas as pl
from jax.experimental.pallas import tpu as pltpu


TOTAL_TIME_STEPS = 1000
TIME_EMB_DIMS = 128
TIME_EMB_DIMS_EXP = 512


def _sinusoidal_table(total_time_steps: int, time_emb_dims: int) -> jnp.ndarray:
    """Precomputed embedding table, identical to the PyTorch __init__."""
    half_dim = time_emb_dims // 2
    scale = math.log(10000.0) / (half_dim - 1)
    freqs = jnp.exp(jnp.arange(half_dim, dtype=jnp.float32) * -scale)   # (half,)
    ts = jnp.arange(total_time_steps, dtype=jnp.float32)                # (T,)
    args = ts[:, None] * freqs[None, :]                                 # (T, half)
    return jnp.concatenate([jnp.sin(args), jnp.cos(args)], axis=-1)     # (T, 128) f32


def _fused_time_emb_kernel(idx_ref, table_ref, w1_ref, b1_ref, w2_ref, b2_ref,
                           o_ref, emb_ref):
    """Fused gather + Linear + SiLU + Linear, single invocation (no grid).

    idx_ref   : SMEM (B,)        int32 timestep indices
    table_ref : VMEM (T, 128)    f32 sinusoidal table
    w1_ref    : VMEM (128, 512)  bf16
    b1_ref    : VMEM (1, 512)    f32
    w2_ref    : VMEM (512, 512)  bf16
    b2_ref    : VMEM (1, 512)    f32
    o_ref     : VMEM (B, 512)    f32 output
    emb_ref   : VMEM (B, 128)    f32 scratch for the gathered rows
    """
    batch = emb_ref.shape[0]

    # --- in-kernel gather: copy requested table rows into VMEM scratch ---
    # batch is a small static int -> fully unrolled; each copy is a dynamic
    # sublane-start read driven by a scalar loaded from SMEM.
    for i in range(batch):
        t = idx_ref[i]
        emb_ref[pl.ds(i, 1), :] = table_ref[pl.ds(t, 1), :]

    # --- MLP: bf16 weights on the MXU, f32 accumulation & elementwise ---
    x = emb_ref[...].astype(jnp.bfloat16)                                 # (B, 128)
    h = jnp.dot(x, w1_ref[...], preferred_element_type=jnp.float32)       # (B, 512) f32
    h = h + b1_ref[...]
    h = h * jax.nn.sigmoid(h)                                             # SiLU in f32 (v5e-safe)
    o = jnp.dot(h.astype(jnp.bfloat16), w2_ref[...],
                preferred_element_type=jnp.float32)                       # (B, 512) f32
    o_ref[...] = (o + b2_ref[...]).astype(o_ref.dtype)


def sinusoidal_position_embeddings(time_idx, params):
    """time_idx: (B,) int32 in [0, TOTAL_TIME_STEPS) -> (B, 512) f32."""
    batch = time_idx.shape[0]
    table = params["table"]
    w1, b1, w2, b2 = params["w1"], params["b1"], params["w2"], params["b2"]
    d_in = table.shape[1]
    d_hid = w1.shape[1]
    d_out = w2.shape[1]

    kernel = pl.pallas_call(
        _fused_time_emb_kernel,
        out_shape=jax.ShapeDtypeStruct((batch, d_out), jnp.float32),
        in_specs=[
            pl.BlockSpec(memory_space=pltpu.MemorySpace.SMEM),   # time indices
            pl.BlockSpec(memory_space=pltpu.MemorySpace.VMEM),   # sinusoidal table (f32)
            pl.BlockSpec(memory_space=pltpu.MemorySpace.VMEM),   # W1 (bf16)
            pl.BlockSpec(memory_space=pltpu.MemorySpace.VMEM),   # b1 (f32)
            pl.BlockSpec(memory_space=pltpu.MemorySpace.VMEM),   # W2 (bf16)
            pl.BlockSpec(memory_space=pltpu.MemorySpace.VMEM),   # b2 (f32)
        ],
        out_specs=pl.BlockSpec(memory_space=pltpu.MemorySpace.VMEM),
        scratch_shapes=[pltpu.VMEM((batch, d_in), jnp.float32)],
    )
    return kernel(
        time_idx.astype(jnp.int32),
        table,
        w1,
        b1.reshape(1, d_hid),
        w2,
        b2.reshape(1, d_out),
    )


def init_params(key):
    """Deterministic nn.Linear-style init (uniform ±1/sqrt(fan_in))."""
    k1, k2, k3, k4 = jax.random.split(key, 4)
    bound1 = 1.0 / math.sqrt(TIME_EMB_DIMS)
    bound2 = 1.0 / math.sqrt(TIME_EMB_DIMS_EXP)
    w1 = jax.random.uniform(k1, (TIME_EMB_DIMS, TIME_EMB_DIMS_EXP),
                            jnp.float32, -bound1, bound1)
    b1 = jax.random.uniform(k2, (TIME_EMB_DIMS_EXP,), jnp.float32, -bound1, bound1)
    w2 = jax.random.uniform(k3, (TIME_EMB_DIMS_EXP, TIME_EMB_DIMS_EXP),
                            jnp.float32, -bound2, bound2)
    b2 = jax.random.uniform(k4, (TIME_EMB_DIMS_EXP,), jnp.float32, -bound2, bound2)
    return {
        "table": _sinusoidal_table(TOTAL_TIME_STEPS, TIME_EMB_DIMS),  # f32 (T, 128)
        "w1": w1.astype(jnp.bfloat16),   # bf16 weights: halve HBM DMA & MXU passes
        "b1": b1,                        # f32 bias
        "w2": w2.astype(jnp.bfloat16),
        "b2": b2,
        # f32 copies kept only for the semantics reference check below
        "w1_f32": w1,
        "w2_f32": w2,
    }


def _reference_bf16(time_idx, params):
    """Pure-JAX reference with the SAME dtypes as the kernel (tight check)."""
    x = jnp.take(params["table"], time_idx, axis=0)
    h = jnp.dot(x.astype(jnp.bfloat16), params["w1"],
                preferred_element_type=jnp.float32) + params["b1"]
    h = h * jax.nn.sigmoid(h)
    return jnp.dot(h.astype(jnp.bfloat16), params["w2"],
                   preferred_element_type=jnp.float32) + params["b2"]


def _reference_f32(time_idx, params):
    """Pure-f32 reference matching the original module's semantics (loose check)."""
    x = jnp.take(params["table"], time_idx, axis=0)
    h = x @ params["w1_f32"] + params["b1"]
    h = h * jax.nn.sigmoid(h)
    return h @ params["w2_f32"] + params["b2"]


if __name__ == "__main__":
    key = jax.random.PRNGKey(0)
    params = init_params(key)

    batch = 8
    time_idx = jax.random.randint(
        jax.random.PRNGKey(1), (batch,), 0, TOTAL_TIME_STEPS, dtype=jnp.int32
    )

    out = sinusoidal_position_embeddings(time_idx, params)
    out = jax.block_until_ready(out)
    assert out.shape == (batch, TIME_EMB_DIMS_EXP), out.shape

    ref_bf16 = _reference_bf16(time_idx, params)
    assert jnp.allclose(out, ref_bf16, atol=2e-3, rtol=2e-3), \
        "mismatch vs bf16-matched reference"

    ref_f32 = _reference_f32(time_idx, params)
    assert jnp.allclose(out, ref_f32, atol=5e-2), \
        "drifted too far from f32 module semantics"

    print("KERNEL_OK")
</pallas_src>

<mosaic_0001>
module attributes {stable_mosaic.version = 11 : i64} {
  func.func @_fused_time_emb_kernel(%arg0: memref<8xi32, #tpu.memory_space<smem>>, %arg1: memref<1000x128xf32, #tpu.memory_space<vmem>>, %arg2: memref<128x512xbf16, #tpu.memory_space<vmem>>, %arg3: memref<1x512xf32, #tpu.memory_space<vmem>>, %arg4: memref<512x512xbf16, #tpu.memory_space<vmem>>, %arg5: memref<1x512xf32, #tpu.memory_space<vmem>>, %arg6: memref<8x512xf32, #tpu.memory_space<vmem>>, %arg7: memref<8x128xf32, #tpu.memory_space<vmem>>) attributes {dimension_semantics = [], scalar_prefetch = 0 : i64, scratch_operands = 1 : i64, tpu.core_type = #tpu.core_type<tc>} {
    %c0 = arith.constant 0 : index
    %0 = memref.load %arg0[%c0] : memref<8xi32, #tpu.memory_space<smem>>
    %1 = arith.index_cast %0 : i32 to index
    %c0_0 = arith.constant 0 : index
    %2 = vector.load %arg1[%1, %c0_0] : memref<1000x128xf32, #tpu.memory_space<vmem>>, vector<1x128xf32>
    %c0_1 = arith.constant 0 : index
    %c0_2 = arith.constant 0 : index
    %3 = vector.load %arg7[%c0_1, %c0_2] : memref<8x128xf32, #tpu.memory_space<vmem>>, vector<1x128xf32>
    tpu.vector_store %arg7[%c0_1, %c0_2], %2 {strides = array<i32>} : memref<8x128xf32, #tpu.memory_space<vmem>>, vector<1x128xf32>,
    %c1 = arith.constant 1 : index
    %4 = memref.load %arg0[%c1] : memref<8xi32, #tpu.memory_space<smem>>
    %5 = arith.index_cast %4 : i32 to index
    %c0_3 = arith.constant 0 : index
    %6 = vector.load %arg1[%5, %c0_3] : memref<1000x128xf32, #tpu.memory_space<vmem>>, vector<1x128xf32>
    %c1_4 = arith.constant 1 : index
    %c0_5 = arith.constant 0 : index
    %7 = vector.load %arg7[%c1_4, %c0_5] : memref<8x128xf32, #tpu.memory_space<vmem>>, vector<1x128xf32>
    tpu.vector_store %arg7[%c1_4, %c0_5], %6 {strides = array<i32>} : memref<8x128xf32, #tpu.memory_space<vmem>>, vector<1x128xf32>,
    %c2 = arith.constant 2 : index
    %8 = memref.load %arg0[%c2] : memref<8xi32, #tpu.memory_space<smem>>
    %9 = arith.index_cast %8 : i32 to index
    %c0_6 = arith.constant 0 : index
    %10 = vector.load %arg1[%9, %c0_6] : memref<1000x128xf32, #tpu.memory_space<vmem>>, vector<1x128xf32>
    %c2_7 = arith.constant 2 : index
    %c0_8 = arith.constant 0 : index
    %11 = vector.load %arg7[%c2_7, %c0_8] : memref<8x128xf32, #tpu.memory_space<vmem>>, vector<1x128xf32>
    tpu.vector_store %arg7[%c2_7, %c0_8], %10 {strides = array<i32>} : memref<8x128xf32, #tpu.memory_space<vmem>>, vector<1x128xf32>,
    %c3 = arith.constant 3 : index
    %12 = memref.load %arg0[%c3] : memref<8xi32, #tpu.memory_space<smem>>
    %13 = arith.index_cast %12 : i32 to index
    %c0_9 = arith.constant 0 : index
    %14 = vector.load %arg1[%13, %c0_9] : memref<1000x128xf32, #tpu.memory_space<vmem>>, vector<1x128xf32>
    %c3_10 = arith.constant 3 : index
    %c0_11 = arith.constant 0 : index
    %15 = vector.load %arg7[%c3_10, %c0_11] : memref<8x128xf32, #tpu.memory_space<vmem>>, vector<1x128xf32>
    tpu.vector_store %arg7[%c3_10, %c0_11], %14 {strides = array<i32>} : memref<8x128xf32, #tpu.memory_space<vmem>>, vector<1x128xf32>,
    %c4 = arith.constant 4 : index
    %16 = memref.load %arg0[%c4] : memref<8xi32, #tpu.memory_space<smem>>
    %17 = arith.index_cast %16 : i32 to index
    %c0_12 = arith.constant 0 : index
    %18 = vector.load %arg1[%17, %c0_12] : memref<1000x128xf32, #tpu.memory_space<vmem>>, vector<1x128xf32>
    %c4_13 = arith.constant 4 : index
    %c0_14 = arith.constant 0 : index
    %19 = vector.load %arg7[%c4_13, %c0_14] : memref<8x128xf32, #tpu.memory_space<vmem>>, vector<1x128xf32>
    tpu.vector_store %arg7[%c4_13, %c0_14], %18 {strides = array<i32>} : memref<8x128xf32, #tpu.memory_space<vmem>>, vector<1x128xf32>,
    %c5 = arith.constant 5 : index
    %20 = memref.load %arg0[%c5] : memref<8xi32, #tpu.memory_space<smem>>
    %21 = arith.index_cast %20 : i32 to index
    %c0_15 = arith.constant 0 : index
    %22 = vector.load %arg1[%21, %c0_15] : memref<1000x128xf32, #tpu.memory_space<vmem>>, vector<1x128xf32>
    %c5_16 = arith.constant 5 : index
    %c0_17 = arith.constant 0 : index
    %23 = vector.load %arg7[%c5_16, %c0_17] : memref<8x128xf32, #tpu.memory_space<vmem>>, vector<1x128xf32>
    tpu.vector_store %arg7[%c5_16, %c0_17], %22 {strides = array<i32>} : memref<8x128xf32, #tpu.memory_space<vmem>>, vector<1x128xf32>,
    %c6 = arith.constant 6 : index
    %24 = memref.load %arg0[%c6] : memref<8xi32, #tpu.memory_space<smem>>
    %25 = arith.index_cast %24 : i32 to index
    %c0_18 = arith.constant 0 : index
    %26 = vector.load %arg1[%25, %c0_18] : memref<1000x128xf32, #tpu.memory_space<vmem>>, vector<1x128xf32>
    %c6_19 = arith.constant 6 : index
    %c0_20 = arith.constant 0 : index
    %27 = vector.load %arg7[%c6_19, %c0_20] : memref<8x128xf32, #tpu.memory_space<vmem>>, vector<1x128xf32>
    tpu.vector_store %arg7[%c6_19, %c0_20], %26 {strides = array<i32>} : memref<8x128xf32, #tpu.memory_space<vmem>>, vector<1x128xf32>,
    %c7 = arith.constant 7 : index
    %28 = memref.load %arg0[%c7] : memref<8xi32, #tpu.memory_space<smem>>
    %29 = arith.index_cast %28 : i32 to index
    %c0_21 = arith.constant 0 : index
    %30 = vector.load %arg1[%29, %c0_21] : memref<1000x128xf32, #tpu.memory_space<vmem>>, vector<1x128xf32>
    %c7_22 = arith.constant 7 : index
    %c0_23 = arith.constant 0 : index
    %31 = vector.load %arg7[%c7_22, %c0_23] : memref<8x128xf32, #tpu.memory_space<vmem>>, vector<1x128xf32>
    tpu.vector_store %arg7[%c7_22, %c0_23], %30 {strides = array<i32>} : memref<8x128xf32, #tpu.memory_space<vmem>>, vector<1x128xf32>,
    %c0_24 = arith.constant 0 : index
    %c0_25 = arith.constant 0 : index
    %32 = vector.load %arg7[%c0_24, %c0_25] : memref<8x128xf32, #tpu.memory_space<vmem>>, vector<8x128xf32>
    %33 = arith.truncf %32 : vector<8x128xf32> to vector<8x128xbf16>
    %c0_26 = arith.constant 0 : index
    %c0_27 = arith.constant 0 : index
    %34 = vector.load %arg2[%c0_26, %c0_27] : memref<128x512xbf16, #tpu.memory_space<vmem>>, vector<128x512xbf16>
    %cst = arith.constant dense<0.000000e+00> : vector<8x512xf32>
    %35 = tpu.matmul %33, %34, %cst {dimension_numbers = #tpu.dot_dimension_numbers<[1], [0], [0], [1], [0, 0, 1, 1], [], []>} : vector<8x128xbf16>, vector<128x512xbf16>, vector<8x512xf32> -> vector<8x512xf32>
    %c0_28 = arith.constant 0 : index
    %c0_29 = arith.constant 0 : index
    %36 = vector.load %arg3[%c0_28, %c0_29] : memref<1x512xf32, #tpu.memory_space<vmem>>, vector<1x512xf32>
    %37 = vector.broadcast %36 : vector<1x512xf32> to vector<8x512xf32>
    %38 = arith.addf %35, %37 : vector<8x512xf32>
    %39 = arith.negf %38 : vector<8x512xf32>
    %40 = math.exp %39 : vector<8x512xf32>
    %cst_30 = arith.constant 1.000000e+00 : f32
    %41 = vector.broadcast %cst_30 : f32 to vector<8x512xf32>
    %42 = arith.addf %41, %40 : vector<8x512xf32>
    %43 = arith.divf %41, %42 : vector<8x512xf32>
    %44 = arith.mulf %38, %43 : vector<8x512xf32>
    %45 = arith.truncf %44 : vector<8x512xf32> to vector<8x512xbf16>
    %c0_31 = arith.constant 0 : index
    %c0_32 = arith.constant 0 : index
    %46 = vector.load %arg4[%c0_31, %c0_32] : memref<512x512xbf16, #tpu.memory_space<vmem>>, vector<512x512xbf16>
    %cst_33 = arith.constant dense<0.000000e+00> : vector<8x512xf32>
    %47 = tpu.matmul %45, %46, %cst_33 {dimension_numbers = #tpu.dot_dimension_numbers<[1], [0], [0], [1], [0, 0, 1, 1], [], []>} : vector<8x512xbf16>, vector<512x512xbf16>, vector<8x512xf32> -> vector<8x512xf32>
    %c0_34 = arith.constant 0 : index
    %c0_35 = arith.constant 0 : index
    %48 = vector.load %arg5[%c0_34, %c0_35] : memref<1x512xf32, #tpu.memory_space<vmem>>, vector<1x512xf32>
    %49 = vector.broadcast %48 : vector<1x512xf32> to vector<8x512xf32>
    %50 = arith.addf %47, %49 : vector<8x512xf32>
    %c0_36 = arith.constant 0 : index
    %c0_37 = arith.constant 0 : index
    %51 = vector.load %arg6[%c0_36, %c0_37] : memref<8x512xf32, #tpu.memory_space<vmem>>, vector<8x512xf32>
    tpu.vector_store %arg6[%c0_36, %c0_37], %50 {strides = array<i32>} : memref<8x512xf32, #tpu.memory_space<vmem>>, vector<8x512xf32>,
    return
  }
}

</mosaic_0001>

<llo_original>
// kernel: tpu_custom_call.1
$region0: #{tpu_custom_call.1}
  #allocation0 [shape = 'u32[]', space=smem, size = 0x4, offset = 0x4, fixed_abs, tag = 'smem constant byte address 0x4 - core index']
  #allocation1 [shape = 'u32[72,128]{1,0:T(1,128)}', space=vmem, size = 0x9000, scoped, tag = 'internal scratch']
  #allocation2 [shape = 'f32[8,128]{1,0:T(8,128)}', space=vmem, size = 0x1000, scoped, tag = 'scratch operand']
  %s0 = inlined_call_operand.hbm [shape: s32[8], index: 0, kind: input, shape index: {}]
  %s1 = inlined_call_operand.hbm [shape: f32[1000,128], index: 1, kind: input, shape index: {}]
  %s2 = inlined_call_operand.hbm [shape: bf16[128,512], index: 2, kind: input, shape index: {}]
  %s3 = inlined_call_operand.hbm [shape: f32[1,512], index: 3, kind: input, shape index: {}]
  %s4 = inlined_call_operand.hbm [shape: bf16[512,512], index: 4, kind: input, shape index: {}]
  %s5 = inlined_call_operand.vmem [shape: f32[1,512], index: 5, kind: input, shape index: {}]
  %s6 = inlined_call_operand.hbm [shape: f32[8,512], index: 6, kind: output, shape index: {}]
  %s7 = sld [smem:[#allocation0]]
  $region54: #{tpu_custom_call.1} parent=0
    _
  %s9 = ssub.s32 1, %s7
  %s10 = scalar_select 0, %s9, %s7
  $region1: #{tpu_custom_call.1} parent=0
    #allocation3 [shape = 'u8[512]{0}', space=smem, size = 0x200, scoped, tag = 'input window, operand 0, single buffered']
    #allocation4 [shape = 's32[1]{0}', space=sflag, size = 0x4, scoped, tag = 'scoped memory for tpu_custom_call.1']
    #allocation5 [shape = 's32[1]{0}', space=sflag, size = 0x4, scoped, tag = 'scoped memory for tpu_custom_call.1']
    #allocation6 [shape = 's32[1]{0}', space=sflag, size = 0x4, scoped, tag = 'scoped memory for tpu_custom_call.1']
    #allocation7 [shape = 'u8[512000]{0}', space=vmem, size = 0x7d000, scoped, tag = 'input window, operand 1, single buffered']
    #allocation8 [shape = 'u8[131072]{0}', space=vmem, size = 0x20000, scoped, tag = 'input window, operand 2, single buffered']
    #allocation9 [shape = 's32[1]{0}', space=sflag, size = 0x4, scoped, tag = 'scoped memory for tpu_custom_call.1']
    #allocation10 [shape = 'u8[2048]{0}', space=vmem, size = 0x800, scoped, tag = 'input window, operand 3, single buffered']
    #allocation11 [shape = 'u8[524288]{0}', space=vmem, size = 0x80000, scoped, tag = 'input window, operand 4, single buffered']
    #allocation12 [shape = 's32[1]{0}', space=sflag, size = 0x4, scoped, tag = 'scoped memory for tpu_custom_call.1']
    #allocation13 [shape = 'u8[16384]{0}', space=vmem, size = 0x4000, scoped, tag = 'output window, operand 0, single buffered']
    %11 = vsyncpa [#allocation6], 0
    %12 = vsyncpa [#allocation4], 0
    %13 = vsyncpa [#allocation9], 0
    %14 = vsyncpa [#allocation12], 0
    %15 = vsyncpa [#allocation5], 0
    // Predicated region
    $region2: #{tpu_custom_call.1} parent=1 // pred_check
      _
    $region3: #{tpu_custom_call.1} parent=1 // pred_check_branch
      %17 = sbr.rel (0) target = $region5
    $region4: #{tpu_custom_call.1} parent=1 // pred_region
      %19 = vsyncadd [#allocation6], 0
      %s21 = sshll.u32 %s0, 4
      %s22 = int_to_ptr.hbm [resolvable:$true] %s21
      %24 = dma.hbm_to_smem %s22, 16, [#allocation3], [#allocation6]
    $region5: #{tpu_custom_call.1} parent=1 // pred_fallthru
      _
    // Predicated region
    $region6: #{tpu_custom_call.1} parent=1 // pred_check
      _
    $region7: #{tpu_custom_call.1} parent=1 // pred_check_branch
      %26 = sbr.rel (0) target = $region9
    $region8: #{tpu_custom_call.1} parent=1 // pred_region
      %28 = vsyncadd [#allocation4], 0
      %s29 = sshll.u32 %s1, 4
      %s30 = int_to_ptr.hbm [resolvable:$true] %s29
      %s31 = sshll.u32 [#allocation7], 4
      %s32 = int_to_ptr.vmem [resolvable:$true] %s31
      %37 = dma.hbm_to_vmem [thread:$0]  %s30, 16000, %s32, [#allocation4], 128, 128, 8
    $region9: #{tpu_custom_call.1} parent=1 // pred_fallthru
      _
    // Predicated region
    $region10: #{tpu_custom_call.1} parent=1 // pred_check
      _
    $region11: #{tpu_custom_call.1} parent=1 // pred_check_branch
      %39 = sbr.rel (0) target = $region13
    $region12: #{tpu_custom_call.1} parent=1 // pred_region
      %41 = vsyncadd [#allocation9], 0
      %s42 = sshll.u32 %s2, 4
      %s43 = int_to_ptr.hbm [resolvable:$true] %s42
      %s44 = sshll.u32 [#allocation8], 4
      %s45 = int_to_ptr.vmem [resolvable:$true] %s44
      %50 = dma.hbm_to_vmem [thread:$0]  %s43, 4096, %s45, [#allocation9], 256, 256, 16
    $region13: #{tpu_custom_call.1} parent=1 // pred_fallthru
      _
    // Predicated region
    $region14: #{tpu_custom_call.1} parent=1 // pred_check
      _
    $region15: #{tpu_custom_call.1} parent=1 // pred_check_branch
      %52 = sbr.rel (0) target = $region17
    $region16: #{tpu_custom_call.1} parent=1 // pred_region
      %54 = vsyncadd [#allocation9], 0
      %s56 = sshll.u32 %s3, 4
      %s57 = int_to_ptr.hbm [resolvable:$true] %s56
      %s58 = sshll.u32 [#allocation10], 4
      %s59 = int_to_ptr.vmem [resolvable:$true] %s58
      %61 = dma.hbm_to_vmem [thread:$0]  %s57, 64, %s59, [#allocation9]
    $region17: #{tpu_custom_call.1} parent=1 // pred_fallthru
      _
    // Predicated region
    $region18: #{tpu_custom_call.1} parent=1 // pred_check
      _
    $region19: #{tpu_custom_call.1} parent=1 // pred_check_branch
      %63 = sbr.rel (0) target = $region21
    $region20: #{tpu_custom_call.1} parent=1 // pred_region
      %65 = vsyncadd [#allocation12], 0
      %s66 = sshll.u32 %s4, 4
      %s67 = int_to_ptr.hbm [resolvable:$true] %s66
      %s68 = sshll.u32 [#allocation11], 4
      %s69 = int_to_ptr.vmem [resolvable:$true] %s68
      %74 = dma.hbm_to_vmem [thread:$0]  %s67, 16384, %s69, [#allocation12], 256, 256, 16
    $region21: #{tpu_custom_call.1} parent=1 // pred_fallthru
      _
    // Predicated region
    $region22: #{tpu_custom_call.1} parent=1 // pred_check
      _
    $region23: #{tpu_custom_call.1} parent=1 // pred_check_branch
      %76 = sbr.rel (0) target = $region25
    $region24: #{tpu_custom_call.1} parent=1 // pred_region
      _
    $region25: #{tpu_custom_call.1} parent=1 // pred_fallthru
      _
    // Predicated region
    $region26: #{tpu_custom_call.1} parent=1 // pred_check
      _
    $region27: #{tpu_custom_call.1} parent=1 // pred_check_branch
      %78 = sbr.rel (0) target = $region29
    $region28: #{tpu_custom_call.1} parent=1 // pred_region
      %80 = dma.done [#allocation6], 16
    $region29: #{tpu_custom_call.1} parent=1 // pred_fallthru
      _
    // Predicated region
    $region30: #{tpu_custom_call.1} parent=1 // pred_check
      _
    $region31: #{tpu_custom_call.1} parent=1 // pred_check_branch
      %82 = sbr.rel (0) target = $region33
    $region32: #{tpu_custom_call.1} parent=1 // pred_region
      %84 = dma.done [#allocation4], 16000
    $region33: #{tpu_custom_call.1} parent=1 // pred_fallthru
      _
    // Predicated region
    $region34: #{tpu_custom_call.1} parent=1 // pred_check
      _
    $region35: #{tpu_custom_call.1} parent=1 // pred_check_branch
      %86 = sbr.rel (0) target = $region37
    $region36: #{tpu_custom_call.1} parent=1 // pred_region
      %88 = dma.done [#allocation9], 4096
    $region37: #{tpu_custom_call.1} parent=1 // pred_fallthru
      _
    // Predicated region
    $region38: #{tpu_custom_call.1} parent=1 // pred_check
      _
    $region39: #{tpu_custom_call.1} parent=1 // pred_check_branch
      %90 = sbr.rel (0) target = $region41
    $region40: #{tpu_custom_call.1} parent=1 // pred_region
      %92 = dma.done [#allocation9], 64
    $region41: #{tpu_custom_call.1} parent=1 // pred_fallthru
      _
    // Predicated region
    $region42: #{tpu_custom_call.1} parent=1 // pred_check
      _
    $region43: #{tpu_custom_call.1} parent=1 // pred_check_branch
      %94 = sbr.rel (0) target = $region45
    $region44: #{tpu_custom_call.1} parent=1 // pred_region
      %96 = dma.done [#allocation12], 16384
    $region45: #{tpu_custom_call.1} parent=1 // pred_fallthru
      _
    %97 = sfence
    %s98 = sld [smem:[#allocation3]]
    %s99 = scalar_lea.vmem [#allocation7], %s98
    %v100 = vld [vmem:[%s99] sm:$0x1]
    %101 = vst [vmem:[#allocation2] sm:$0x1] %v100
    %s102 = sld [smem:[#allocation3 + $0x1]]
    %s103 = scalar_lea.vmem [#allocation7], %s102
    %v104 = vld [vmem:[%s103] sm:$0x1]
    %105 = vst [vmem:[#allocation2 + $0x1] sm:$0x1] %v104
    %s106 = sld [smem:[#allocation3 + $0x2]]
    %s107 = scalar_lea.vmem [#allocation7], %s106
    %v108 = vld [vmem:[%s107] sm:$0x1]
    %109 = vst [vmem:[#allocation2 + $0x2] sm:$0x1] %v108
    %s110 = sld [smem:[#allocation3 + $0x3]]
    %s111 = scalar_lea.vmem [#allocation7], %s110
    %v112 = vld [vmem:[%s111] sm:$0x1]
    %113 = vst [vmem:[#allocation2 + $0x3] sm:$0x1] %v112
    %s114 = sld [smem:[#allocation3 + $0x4]]
    %s115 = scalar_lea.vmem [#allocation7], %s114
    %v116 = vld [vmem:[%s115] sm:$0x1]
    %117 = vst [vmem:[#allocation2 + $0x4] sm:$0x1] %v116
    %s118 = sld [smem:[#allocation3 + $0x5]]
    %s119 = scalar_lea.vmem [#allocation7], %s118
    %v120 = vld [vmem:[%s119] sm:$0x1]
    %121 = vst [vmem:[#allocation2 + $0x5] sm:$0x1] %v120
    %s122 = sld [smem:[#allocation3 + $0x6]]
    %s123 = scalar_lea.vmem [#allocation7], %s122
    %v124 = vld [vmem:[%s123] sm:$0x1]
    %125 = vst [vmem:[#allocation2 + $0x6] sm:$0x1] %v124
    %s126 = sld [smem:[#allocation3 + $0x7]]
    %s127 = scalar_lea.vmem [#allocation7], %s126
    %v128 = vld [vmem:[%s127] sm:$0x1]
    %129 = vst [vmem:[#allocation2 + $0x7] sm:$0x1] %v128
    %v130 = vld [vmem:[#allocation2] sm:$0xff]
    %v131 = vpack.c.bf16 %v130, %v130
    %v132 = vld [vmem:[#allocation8] sm:$0xff]
    %v133 = vld [vmem:[#allocation8 + $0x8] sm:$0xff]
    %v134 = vld [vmem:[#allocation8 + $0x10] sm:$0xff]
    %v135 = vld [vmem:[#allocation8 + $0x18] sm:$0xff]
    %v136 = vld [vmem:[#allocation8 + $0x20] sm:$0xff]
    %v137 = vld [vmem:[#allocation8 + $0x28] sm:$0xff]
    %v138 = vld [vmem:[#allocation8 + $0x30] sm:$0xff]
    %v139 = vld [vmem:[#allocation8 + $0x38] sm:$0xff]
    %v140 = vld [vmem:[#allocation8 + $0x40] sm:$0xff]
    %v141 = vld [vmem:[#allocation8 + $0x48] sm:$0xff]
    %v142 = vld [vmem:[#allocation8 + $0x50] sm:$0xff]
    %v143 = vld [vmem:[#allocation8 + $0x58] sm:$0xff]
    %v144 = vld [vmem:[#allocation8 + $0x60] sm:$0xff]
    %v145 = vld [vmem:[#allocation8 + $0x68] sm:$0xff]
    %v146 = vld [vmem:[#allocation8 + $0x70] sm:$0xff]
    %v147 = vld [vmem:[#allocation8 + $0x78] sm:$0xff]
    %v148 = vld [vmem:[#allocation8 + $0x80] sm:$0xff]
    %v149 = vld [vmem:[#allocation8 + $0x88] sm:$0xff]
    %v150 = vld [vmem:[#allocation8 + $0x90] sm:$0xff]
    %v151 = vld [vmem:[#allocation8 + $0x98] sm:$0xff]
    %v152 = vld [vmem:[#allocation8 + $0xa0] sm:$0xff]
    %v153 = vld [vmem:[#allocation8 + $0xa8] sm:$0xff]
    %v154 = vld [vmem:[#allocation8 + $0xb0] sm:$0xff]
    %v155 = vld [vmem:[#allocation8 + $0xb8] sm:$0xff]
    %v156 = vld [vmem:[#allocation8 + $0xc0] sm:$0xff]
    %v157 = vld [vmem:[#allocation8 + $0xc8] sm:$0xff]
    %v158 = vld [vmem:[#allocation8 + $0xd0] sm:$0xff]
    %v159 = vld [vmem:[#allocation8 + $0xd8] sm:$0xff]
    %v160 = vld [vmem:[#allocation8 + $0xe0] sm:$0xff]
    %v161 = vld [vmem:[#allocation8 + $0xe8] sm:$0xff]
    %v162 = vld [vmem:[#allocation8 + $0xf0] sm:$0xff]
    %v163 = vld [vmem:[#allocation8 + $0xf8] sm:$0xff]
    %v164 = vld [vmem:[#allocation10] sm:$0xf]
    %v166 = vperm.slane %v164, 0
    %v167 = vperm.slane %v164, 1
    %v168 = vperm.slane %v164, 2
    %v169 = vperm.slane %v164, 3
    %v206 = vunpack.c.l.b16 %v132
    %v207 = vunpack.c.h.b16 %v132
    %v208 = vunpack.c.l.b16 %v133
    %v209 = vunpack.c.h.b16 %v133
    %v210 = vunpack.c.l.b16 %v134
    %v211 = vunpack.c.h.b16 %v134
    %v212 = vunpack.c.l.b16 %v135
    %v213 = vunpack.c.h.b16 %v135
    %v214 = vunpack.c.l.b16 %v136
    %v215 = vunpack.c.h.b16 %v136
    %v216 = vunpack.c.l.b16 %v137
    %v217 = vunpack.c.h.b16 %v137
    %v218 = vunpack.c.l.b16 %v138
    %v219 = vunpack.c.h.b16 %v138
    %v220 = vunpack.c.l.b16 %v139
    %v221 = vunpack.c.h.b16 %v139
    %v222 = vunpack.c.l.b16 %v140
    %v223 = vunpack.c.h.b16 %v140
    %v224 = vunpack.c.l.b16 %v141
    %v225 = vunpack.c.h.b16 %v141
    %v226 = vunpack.c.l.b16 %v142
    %v227 = vunpack.c.h.b16 %v142
    %v228 = vunpack.c.l.b16 %v143
    %v229 = vunpack.c.h.b16 %v143
    %v230 = vunpack.c.l.b16 %v144
    %v231 = vunpack.c.h.b16 %v144
    %v232 = vunpack.c.l.b16 %v145
    %v233 = vunpack.c.h.b16 %v145
    %v234 = vunpack.c.l.b16 %v146
    %v235 = vunpack.c.h.b16 %v146
    %v236 = vunpack.c.l.b16 %v147
    %v237 = vunpack.c.h.b16 %v147
    %v238 = vunpack.c.l.b16 %v148
    %v239 = vunpack.c.h.b16 %v148
    %v240 = vunpack.c.l.b16 %v149
    %v241 = vunpack.c.h.b16 %v149
    %v242 = vunpack.c.l.b16 %v150
    %v243 = vunpack.c.h.b16 %v150
    %v244 = vunpack.c.l.b16 %v151
    %v245 = vunpack.c.h.b16 %v151
    %v246 = vunpack.c.l.b16 %v152
    %v247 = vunpack.c.h.b16 %v152
    %v248 = vunpack.c.l.b16 %v153
    %v249 = vunpack.c.h.b16 %v153
    %v250 = vunpack.c.l.b16 %v154
    %v251 = vunpack.c.h.b16 %v154
    %v252 = vunpack.c.l.b16 %v155
    %v253 = vunpack.c.h.b16 %v155
    %v254 = vunpack.c.l.b16 %v156
    %v255 = vunpack.c.h.b16 %v156
    %v256 = vunpack.c.l.b16 %v157
    %v257 = vunpack.c.h.b16 %v157
    %v258 = vunpack.c.l.b16 %v158
    %v259 = vunpack.c.h.b16 %v158
    %v260 = vunpack.c.l.b16 %v159
    %v261 = vunpack.c.h.b16 %v159
    %v262 = vunpack.c.l.b16 %v160
    %v263 = vunpack.c.h.b16 %v160
    %v264 = vunpack.c.l.b16 %v161
    %v265 = vunpack.c.h.b16 %v161
    %v266 = vunpack.c.l.b16 %v162
    %v267 = vunpack.c.h.b16 %v162
    %v268 = vunpack.c.l.b16 %v163
    %v269 = vunpack.c.h.b16 %v163
    %v270 = vpack.c.b16 %v210, %v206
    %v271 = vpack.c.b16 %v211, %v207
    %v272 = vpack.c.b16 %v212, %v208
    %v273 = vpack.c.b16 %v213, %v209
    %v274 = vpack.c.b16 %v218, %v214
    %v275 = vpack.c.b16 %v219, %v215
    %v276 = vpack.c.b16 %v220, %v216
    %v277 = vpack.c.b16 %v221, %v217
    %v278 = vpack.c.b16 %v226, %v222
    %v279 = vpack.c.b16 %v227, %v223
    %v280 = vpack.c.b16 %v228, %v224
    %v281 = vpack.c.b16 %v229, %v225
    %v282 = vpack.c.b16 %v234, %v230
    %v283 = vpack.c.b16 %v235, %v231
    %v284 = vpack.c.b16 %v236, %v232
    %v285 = vpack.c.b16 %v237, %v233
    %v286 = vpack.c.b16 %v242, %v238
    %v287 = vpack.c.b16 %v243, %v239
    %v288 = vpack.c.b16 %v244, %v240
    %v289 = vpack.c.b16 %v245, %v241
    %v290 = vpack.c.b16 %v250, %v246
    %v291 = vpack.c.b16 %v251, %v247
    %v292 = vpack.c.b16 %v252, %v248
    %v293 = vpack.c.b16 %v253, %v249
    %v294 = vpack.c.b16 %v258, %v254
    %v295 = vpack.c.b16 %v259, %v255
    %v296 = vpack.c.b16 %v260, %v256
    %v297 = vpack.c.b16 %v261, %v257
    %v298 = vpack.c.b16 %v266, %v262
    %v299 = vpack.c.b16 %v267, %v263
    %v300 = vpack.c.b16 %v268, %v264
    %v301 = vpack.c.b16 %v269, %v265
    %334 = vmatpush.bf16.msra.mxu0 %v298
    %335 = vmatpush.bf16.msra.mxu0 %v294
    %336 = vmatpush.bf16.msra.mxu0 %v290
    %337 = vmatpush.bf16.msra.mxu0 %v286
    %338 = vmatpush.bf16.msra.mxu0 %v282
    %339 = vmatpush.bf16.msra.mxu0 %v278
    %340 = vmatpush.bf16.msra.mxu0 %v274
    %341 = vmatpush.bf16.msra.mxu0 %v270
    %342 = vmatmul.bf16.gmra.mxu0 %v131
    %v343 = vpop.f32.mrf.mxu0
    %v344 = vadd.f32 %v166, %v343
    %v345 = vpop.f32.mrf.mxu0
    %346 = vdwg.mxu0
    %347 = vmatpush.bf16.msra.mxu0 %v299
    %348 = vmatpush.bf16.msra.mxu0 %v295
    %349 = vmatpush.bf16.msra.mxu0 %v291
    %350 = vmatpush.bf16.msra.mxu0 %v287
    %351 = vmatpush.bf16.msra.mxu0 %v283
    %352 = vmatpush.bf16.msra.mxu0 %v279
    %353 = vmatpush.bf16.msra.mxu0 %v275
    %354 = vmatpush.bf16.msra.mxu0 %v271
    %355 = vmatmul.bf16.gmra.mxu0 %v131
    %v356 = vpop.f32.mrf.mxu0
    %v357 = vadd.f32 %v167, %v356
    %v358 = vpop.f32.mrf.mxu0
    %359 = vdwg.mxu0
    %360 = vmatpush.bf16.msra.mxu0 %v300
    %361 = vmatpush.bf16.msra.mxu0 %v296
    %362 = vmatpush.bf16.msra.mxu0 %v292
    %363 = vmatpush.bf16.msra.mxu0 %v288
    %364 = vmatpush.bf16.msra.mxu0 %v284
    %365 = vmatpush.bf16.msra.mxu0 %v280
    %366 = vmatpush.bf16.msra.mxu0 %v276
    %367 = vmatpush.bf16.msra.mxu0 %v272
    %368 = vmatmul.bf16.gmra.mxu0 %v131
    %v369 = vpop.f32.mrf.mxu0
    %v370 = vadd.f32 %v168, %v369
    %v371 = vpop.f32.mrf.mxu0
    %372 = vdwg.mxu0
    %373 = vmatpush.bf16.msra.mxu0 %v301
    %374 = vmatpush.bf16.msra.mxu0 %v297
    %375 = vmatpush.bf16.msra.mxu0 %v293
    %376 = vmatpush.bf16.msra.mxu0 %v289
    %377 = vmatpush.bf16.msra.mxu0 %v285
    %378 = vmatpush.bf16.msra.mxu0 %v281
    %379 = vmatpush.bf16.msra.mxu0 %v277
    %380 = vmatpush.bf16.msra.mxu0 %v273
    %381 = vmatmul.bf16.gmra.mxu0 %v131
    %v382 = vpop.f32.mrf.mxu0
    %v383 = vadd.f32 %v169, %v382
    %v384 = vpop.f32.mrf.mxu0
    %385 = vdwg.mxu0
    %v386 = vxor.u32 %v344, 2147483648
    %v387 = vxor.u32 %v357, 2147483648
    %v388 = vxor.u32 %v370, 2147483648
    %v389 = vxor.u32 %v383, 2147483648
    %v390 = vmul.f32 %v386, 1.442695
    %v391 = vpow.pop %v390
    %v392 = vmul.f32 %v387, 1.442695
    %v393 = vpow.pop %v392
    %v394 = vmul.f32 %v388, 1.442695
    %v395 = vpow.pop %v394
    %v396 = vmul.f32 %v389, 1.442695
    %v397 = vpow.pop %v396
    %v398 = vadd.f32 %v391, 1.0
    %v399 = vadd.f32 %v393, 1.0
    %v400 = vadd.f32 %v395, 1.0
    %v401 = vadd.f32 %v397, 1.0
    %v402 = vrcp.pop %v398
    %v403 = vmul.f32 %v398, %v402
    %v404 = vsub.f32 1.0, %v403
    %v405 = vmul.f32 %v402, %v404
    %v406 = vadd.f32 %v402, %v405
    %vm407 = vweird.f32 %v398
    %vm408 = vweird.f32 %v402
    %vm409 = vmor %vm407, %vm408
    %v410 = vsel %vm409, %v402, %v406
    %v411 = vand.u32 2147483647, %v398
    %vm412 = vcmp.eq.f32.partialorder %v411, 8.507059e+37
    %v413 = vand.u32 %v398, 2147483648
    %v414 = vor.u32 1.1754944e-38, %v413
    %v415 = vsel %vm412, %v414, %v410
    %v416 = vmul.f32 1.0, %v415
    %v417 = vrcp.pop %v399
    %v418 = vmul.f32 %v399, %v417
    %v419 = vsub.f32 1.0, %v418
    %v420 = vmul.f32 %v417, %v419
    %v421 = vadd.f32 %v417, %v420
    %vm422 = vweird.f32 %v399
    %vm423 = vweird.f32 %v417
    %vm424 = vmor %vm422, %vm423
    %v425 = vsel %vm424, %v417, %v421
    %v426 = vand.u32 2147483647, %v399
    %vm427 = vcmp.eq.f32.partialorder %v426, 8.507059e+37
    %v428 = vand.u32 %v399, 2147483648
    %v429 = vor.u32 1.1754944e-38, %v428
    %v430 = vsel %vm427, %v429, %v425
    %v431 = vmul.f32 1.0, %v430
    %v432 = vrcp.pop %v400
    %v433 = vmul.f32 %v400, %v432
    %v434 = vsub.f32 1.0, %v433
    %v435 = vmul.f32 %v432, %v434
    %v436 = vadd.f32 %v432, %v435
    %vm437 = vweird.f32 %v400
    %vm438 = vweird.f32 %v432
    %vm439 = vmor %vm437, %vm438
    %v440 = vsel %vm439, %v432, %v436
    %v441 = vand.u32 2147483647, %v400
    %vm442 = vcmp.eq.f32.partialorder %v441, 8.507059e+37
    %v443 = vand.u32 %v400, 2147483648
    %v444 = vor.u32 1.1754944e-38, %v443
    %v445 = vsel %vm442, %v444, %v440
    %v446 = vmul.f32 1.0, %v445
    %v447 = vrcp.pop %v401
    %v448 = vmul.f32 %v401, %v447
    %v449 = vsub.f32 1.0, %v448
    %v450 = vmul.f32 %v447, %v449
    %v451 = vadd.f32 %v447, %v450
    %vm452 = vweird.f32 %v401
    %vm453 = vweird.f32 %v447
    %vm454 = vmor %vm452, %vm453
    %v455 = vsel %vm454, %v447, %v451
    %v456 = vand.u32 2147483647, %v401
    %vm457 = vcmp.eq.f32.partialorder %v456, 8.507059e+37
    %v458 = vand.u32 %v401, 2147483648
    %v459 = vor.u32 1.1754944e-38, %v458
    %v460 = vsel %vm457, %v459, %v455
    %v461 = vmul.f32 1.0, %v460
    %v462 = vmul.f32 %v344, %v416
    %v463 = vmul.f32 %v357, %v431
    %v464 = vmul.f32 %v370, %v446
    %v465 = vmul.f32 %v383, %v461
    %v466 = vpack.c.bf16 %v462, %v462
    %v467 = vpack.c.bf16 %v463, %v463
    %v468 = vpack.c.bf16 %v464, %v464
    %v469 = vpack.c.bf16 %v465, %v465
    %v470 = vld [vmem:[#allocation11] sm:$0xff]
    %v471 = vld [vmem:[#allocation11 + $0x8] sm:$0xff]
    %v472 = vld [vmem:[#allocation11 + $0x10] sm:$0xff]
    %v473 = vld [vmem:[#allocation11 + $0x18] sm:$0xff]
    %v474 = vld [vmem:[#allocation11 + $0x20] sm:$0xff]
    %v475 = vld [vmem:[#allocation11 + $0x28] sm:$0xff]
    %v476 = vld [vmem:[#allocation11 + $0x30] sm:$0xff]
    %v477 = vld [vmem:[#allocation11 + $0x38] sm:$0xff]
    %v478 = vld [vmem:[#allocation11 + $0x40] sm:$0xff]
    %v479 = vld [vmem:[#allocation11 + $0x48] sm:$0xff]
    %v480 = vld [vmem:[#allocation11 + $0x50] sm:$0xff]
    %v481 = vld [vmem:[#allocation11 + $0x58] sm:$0xff]
    %v482 = vld [vmem:[#allocation11 + $0x60] sm:$0xff]
    %v483 = vld [vmem:[#allocation11 + $0x68] sm:$0xff]
    %v484 = vld [vmem:[#allocation11 + $0x70] sm:$0xff]
    %v485 = vld [vmem:[#allocation11 + $0x78] sm:$0xff]
    %v486 = vld [vmem:[#allocation11 + $0x80] sm:$0xff]
    %v487 = vld [vmem:[#allocation11 + $0x88] sm:$0xff]
    %v488 = vld [vmem:[#allocation11 + $0x90] sm:$0xff]
    %v489 = vld [vmem:[#allocation11 + $0x98] sm:$0xff]
    %v490 = vld [vmem:[#allocation11 + $0xa0] sm:$0xff]
    %v491 = vld [vmem:[#allocation11 + $0xa8] sm:$0xff]
    %v492 = vld [vmem:[#allocation11 + $0xb0] sm:$0xff]
    %v493 = vld [vmem:[#allocation11 + $0xb8] sm:$0xff]
    %v494 = vld [vmem:[#allocation11 + $0xc0] sm:$0xff]
    %v495 = vld [vmem:[#allocation11 + $0xc8] sm:$0xff]
    %v496 = vld [vmem:[#allocation11 + $0xd0] sm:$0xff]
    %v497 = vld [vmem:[#allocation11 + $0xd8] sm:$0xff]
    %v498 = vld [vmem:[#allocation11 + $0xe0] sm:$0xff]
    %v499 = vld [vmem:[#allocation11 + $0xe8] sm:$0xff]
    %v500 = vld [vmem:[#allocation11 + $0xf0] sm:$0xff]
    %v501 = vld [vmem:[#allocation11 + $0xf8] sm:$0xff]
    %v502 = vld [vmem:[#allocation11 + $0x100] sm:$0xff]
    %v503 = vld [vmem:[#allocation11 + $0x108] sm:$0xff]
    %v504 = vld [vmem:[#allocation11 + $0x110] sm:$0xff]
    %v505 = vld [vmem:[#allocation11 + $0x118] sm:$0xff]
    %v506 = vld [vmem:[#allocation11 + $0x120] sm:$0xff]
    %v507 = vld [vmem:[#allocation11 + $0x128] sm:$0xff]
    %v508 = vld [vmem:[#allocation11 + $0x130] sm:$0xff]
    %v509 = vld [vmem:[#allocation11 + $0x138] sm:$0xff]
    %v510 = vld [vmem:[#allocation11 + $0x140] sm:$0xff]
    %v511 = vld [vmem:[#allocation11 + $0x148] sm:$0xff]
    %v512 = vld [vmem:[#allocation11 + $0x150] sm:$0xff]
    %v513 = vld [vmem:[#allocation11 + $0x158] sm:$0xff]
    %v514 = vld [vmem:[#allocation11 + $0x160] sm:$0xff]
    %v515 = vld [vmem:[#allocation11 + $0x168] sm:$0xff]
    %v516 = vld [vmem:[#allocation11 + $0x170] sm:$0xff]
    %v517 = vld [vmem:[#allocation11 + $0x178] sm:$0xff]
    %v518 = vld [vmem:[#allocation11 + $0x180] sm:$0xff]
    %v519 = vld [vmem:[#allocation11 + $0x188] sm:$0xff]
    %v520 = vld [vmem:[#allocation11 + $0x190] sm:$0xff]
    %v521 = vld [vmem:[#allocation11 + $0x198] sm:$0xff]
    %v522 = vld [vmem:[#allocation11 + $0x1a0] sm:$0xff]
    %v523 = vld [vmem:[#allocation11 + $0x1a8] sm:$0xff]
    %v524 = vld [vmem:[#allocation11 + $0x1b0] sm:$0xff]
    %v525 = vld [vmem:[#allocation11 + $0x1b8] sm:$0xff]
    %v526 = vld [vmem:[#allocation11 + $0x1c0] sm:$0xff]
    %v527 = vld [vmem:[#allocation11 + $0x1c8] sm:$0xff]
    %v528 = vld [vmem:[#allocation11 + $0x1d0] sm:$0xff]
    %v529 = vld [vmem:[#allocation11 + $0x1d8] sm:$0xff]
    %v530 = vld [vmem:[#allocation11 + $0x1e0] sm:$0xff]
    %v531 = vld [vmem:[#allocation11 + $0x1e8] sm:$0xff]
    %v532 = vld [vmem:[#allocation11 + $0x1f0] sm:$0xff]
    %v533 = vld [vmem:[#allocation11 + $0x1f8] sm:$0xff]
    %v534 = vld [vmem:[#allocation11 + $0x200] sm:$0xff]
    %v535 = vld [vmem:[#allocation11 + $0x208] sm:$0xff]
    %v536 = vld [vmem:[#allocation11 + $0x210] sm:$0xff]
    %v537 = vld [vmem:[#allocation11 + $0x218] sm:$0xff]
    %v538 = vld [vmem:[#allocation11 + $0x220] sm:$0xff]
    %v539 = vld [vmem:[#allocation11 + $0x228] sm:$0xff]
    %v540 = vld [vmem:[#allocation11 + $0x230] sm:$0xff]
    %v541 = vld [vmem:[#allocation11 + $0x238] sm:$0xff]
    %v542 = vld [vmem:[#allocation11 + $0x240] sm:$0xff]
    %v543 = vld [vmem:[#allocation11 + $0x248] sm:$0xff]
    %v544 = vld [vmem:[#allocation11 + $0x250] sm:$0xff]
    %v545 = vld [vmem:[#allocation11 + $0x258] sm:$0xff]
    %v546 = vld [vmem:[#allocation11 + $0x260] sm:$0xff]
    %v547 = vld [vmem:[#allocation11 + $0x268] sm:$0xff]
    %v548 = vld [vmem:[#allocation11 + $0x270] sm:$0xff]
    %v549 = vld [vmem:[#allocation11 + $0x278] sm:$0xff]
    %v550 = vld [vmem:[#allocation11 + $0x280] sm:$0xff]
    %v551 = vld [vmem:[#allocation11 + $0x288] sm:$0xff]
    %v552 = vld [vmem:[#allocation11 + $0x290] sm:$0xff]
    %v553 = vld [vmem:[#allocation11 + $0x298] sm:$0xff]
    %v554 = vld [vmem:[#allocation11 + $0x2a0] sm:$0xff]
    %v555 = vld [vmem:[#allocation11 + $0x2a8] sm:$0xff]
    %v556 = vld [vmem:[#allocation11 + $0x2b0] sm:$0xff]
    %v557 = vld [vmem:[#allocation11 + $0x2b8] sm:$0xff]
    %v558 = vld [vmem:[#allocation11 + $0x2c0] sm:$0xff]
    %v559 = vld [vmem:[#allocation11 + $0x2c8] sm:$0xff]
    %v560 = vld [vmem:[#allocation11 + $0x2d0] sm:$0xff]
    %v561 = vld [vmem:[#allocation11 + $0x2d8] sm:$0xff]
    %v562 = vld [vmem:[#allocation11 + $0x2e0] sm:$0xff]
    %v563 = vld [vmem:[#allocation11 + $0x2e8] sm:$0xff]
    %v564 = vld [vmem:[#allocation11 + $0x2f0] sm:$0xff]
    %v565 = vld [vmem:[#allocation11 + $0x2f8] sm:$0xff]
    %v566 = vld [vmem:[#allocation11 + $0x300] sm:$0xff]
    %v567 = vld [vmem:[#allocation11 + $0x308] sm:$0xff]
    %v568 = vld [vmem:[#allocation11 + $0x310] sm:$0xff]
    %v569 = vld [vmem:[#allocation11 + $0x318] sm:$0xff]
    %v570 = vld [vmem:[#allocation11 + $0x320] sm:$0xff]
    %v571 = vld [vmem:[#allocation11 + $0x328] sm:$0xff]
    %v572 = vld [vmem:[#allocation11 + $0x330] sm:$0xff]
    %v573 = vld [vmem:[#allocation11 + $0x338] sm:$0xff]
    %v574 = vld [vmem:[#allocation11 + $0x340] sm:$0xff]
    %v575 = vld [vmem:[#allocation11 + $0x348] sm:$0xff]
    %v576 = vld [vmem:[#allocation11 + $0x350] sm:$0xff]
    %v577 = vld [vmem:[#allocation11 + $0x358] sm:$0xff]
    %v578 = vld [vmem:[#allocation11 + $0x360] sm:$0xff]
    %v579 = vld [vmem:[#allocation11 + $0x368] sm:$0xff]
    %v580 = vld [vmem:[#allocation11 + $0x370] sm:$0xff]
    %v581 = vld [vmem:[#allocation11 + $0x378] sm:$0xff]
    %v582 = vld [vmem:[#allocation11 + $0x380] sm:$0xff]
    %v583 = vld [vmem:[#allocation11 + $0x388] sm:$0xff]
    %v584 = vld [vmem:[#allocation11 + $0x390] sm:$0xff]
    %v585 = vld [vmem:[#allocation11 + $0x398] sm:$0xff]
    %v586 = vld [vmem:[#allocation11 + $0x3a0] sm:$0xff]
    %v587 = vld [vmem:[#allocation11 + $0x3a8] sm:$0xff]
    %v588 = vld [vmem:[#allocation11 + $0x3b0] sm:$0xff]
    %v589 = vld [vmem:[#allocation11 + $0x3b8] sm:$0xff]
    %v590 = vld [vmem:[#allocation11 + $0x3c0] sm:$0xff]
    %v591 = vld [vmem:[#allocation11 + $0x3c8] sm:$0xff]
    %v592 = vld [vmem:[#allocation11 + $0x3d0] sm:$0xff]
    %v593 = vld [vmem:[#allocation11 + $0x3d8] sm:$0xff]
    %v594 = vld [vmem:[#allocation11 + $0x3e0] sm:$0xff]
    %v595 = vld [vmem:[#allocation11 + $0x3e8] sm:$0xff]
    %v596 = vld [vmem:[#allocation11 + $0x3f0] sm:$0xff]
    %v597 = vld [vmem:[#allocation11 + $0x3f8] sm:$0xff]
    %v598 = vld [vmem:[%s5] sm:$0xf]
    %v600 = vperm.slane %v598, 0
    %v601 = vperm.slane %v598, 1
    %v602 = vperm.slane %v598, 2
    %v603 = vperm.slane %v598, 3
    %v736 = vunpack.c.l.b16 %v470
    %v737 = vunpack.c.h.b16 %v470
    %v738 = vunpack.c.l.b16 %v471
    %v739 = vunpack.c.h.b16 %v471
    %v740 = vunpack.c.l.b16 %v472
    %v741 = vunpack.c.h.b16 %v472
    %v742 = vunpack.c.l.b16 %v473
    %v743 = vunpack.c.h.b16 %v473
    %v744 = vunpack.c.l.b16 %v474
    %v745 = vunpack.c.h.b16 %v474
    %v746 = vunpack.c.l.b16 %v475
    %v747 = vunpack.c.h.b16 %v475
    %v748 = vunpack.c.l.b16 %v476
    %v749 = vunpack.c.h.b16 %v476
    %v750 = vunpack.c.l.b16 %v477
    %v751 = vunpack.c.h.b16 %v477
    %v752 = vunpack.c.l.b16 %v478
    %v753 = vunpack.c.h.b16 %v478
    %v754 = vunpack.c.l.b16 %v479
    %v755 = vunpack.c.h.b16 %v479
    %v756 = vunpack.c.l.b16 %v480
    %v757 = vunpack.c.h.b16 %v480
    %v758 = vunpack.c.l.b16 %v481
    %v759 = vunpack.c.h.b16 %v481
    %v760 = vunpack.c.l.b16 %v482
    %v761 = vunpack.c.h.b16 %v482
    %v762 = vunpack.c.l.b16 %v483
    %v763 = vunpack.c.h.b16 %v483
    %v764 = vunpack.c.l.b16 %v484
    %v765 = vunpack.c.h.b16 %v484
    %v766 = vunpack.c.l.b16 %v485
    %v767 = vunpack.c.h.b16 %v485
    %v768 = vunpack.c.l.b16 %v486
    %v769 = vunpack.c.h.b16 %v486
    %v770 = vunpack.c.l.b16 %v487
    %v771 = vunpack.c.h.b16 %v487
    %v772 = vunpack.c.l.b16 %v488
    %v773 = vunpack.c.h.b16 %v488
    %v774 = vunpack.c.l.b16 %v489
    %v775 = vunpack.c.h.b16 %v489
    %v776 = vunpack.c.l.b16 %v490
    %v777 = vunpack.c.h.b16 %v490
    %v778 = vunpack.c.l.b16 %v491
    %v779 = vunpack.c.h.b16 %v491
    %v780 = vunpack.c.l.b16 %v492
    %v781 = vunpack.c.h.b16 %v492
    %v782 = vunpack.c.l.b16 %v493
    %v783 = vunpack.c.h.b16 %v493
    %v784 = vunpack.c.l.b16 %v494
    %v785 = vunpack.c.h.b16 %v494
    %v786 = vunpack.c.l.b16 %v495
    %v787 = vunpack.c.h.b16 %v495
    %v788 = vunpack.c.l.b16 %v496
    %v789 = vunpack.c.h.b16 %v496
    %v790 = vunpack.c.l.b16 %v497
    %v791 = vunpack.c.h.b16 %v497
    %v792 = vunpack.c.l.b16 %v498
    %v793 = vunpack.c.h.b16 %v498
    %v794 = vunpack.c.l.b16 %v499
    %v795 = vunpack.c.h.b16 %v499
    %v796 = vunpack.c.l.b16 %v500
    %v797 = vunpack.c.h.b16 %v500
    %v798 = vunpack.c.l.b16 %v501
    %v799 = vunpack.c.h.b16 %v501
    %v800 = vunpack.c.l.b16 %v502
    %v801 = vunpack.c.h.b16 %v502
    %v802 = vunpack.c.l.b16 %v503
    %v803 = vunpack.c.h.b16 %v503
    %v804 = vunpack.c.l.b16 %v504
    %v805 = vunpack.c.h.b16 %v504
    %v806 = vunpack.c.l.b16 %v505
    %v807 = vunpack.c.h.b16 %v505
    %v808 = vunpack.c.l.b16 %v506
    %v809 = vunpack.c.h.b16 %v506
    %v810 = vunpack.c.l.b16 %v507
    %v811 = vunpack.c.h.b16 %v507
    %v812 = vunpack.c.l.b16 %v508
    %v813 = vunpack.c.h.b16 %v508
    %v814 = vunpack.c.l.b16 %v509
    %v815 = vunpack.c.h.b16 %v509
    %v816 = vunpack.c.l.b16 %v510
    %v817 = vunpack.c.h.b16 %v510
    %v818 = vunpack.c.l.b16 %v511
    %v819 = vunpack.c.h.b16 %v511
    %v820 = vunpack.c.l.b16 %v512
    %v821 = vunpack.c.h.b16 %v512
    %v822 = vunpack.c.l.b16 %v513
    %v823 = vunpack.c.h.b16 %v513
    %v824 = vunpack.c.l.b16 %v514
    %v825 = vunpack.c.h.b16 %v514
    %v826 = vunpack.c.l.b16 %v515
    %v827 = vunpack.c.h.b16 %v515
    %v828 = vunpack.c.l.b16 %v516
    %v829 = vunpack.c.h.b16 %v516
    %v830 = vunpack.c.l.b16 %v517
    %v831 = vunpack.c.h.b16 %v517
    %v832 = vunpack.c.l.b16 %v518
    %v833 = vunpack.c.h.b16 %v518
    %v834 = vunpack.c.l.b16 %v519
    %v835 = vunpack.c.h.b16 %v519
    %v836 = vunpack.c.l.b16 %v520
    %v837 = vunpack.c.h.b16 %v520
    %v838 = vunpack.c.l.b16 %v521
    %v839 = vunpack.c.h.b16 %v521
    %v840 = vunpack.c.l.b16 %v522
    %v841 = vunpack.c.h.b16 %v522
    %v842 = vunpack.c.l.b16 %v523
    %v843 = vunpack.c.h.b16 %v523
    %v844 = vunpack.c.l.b16 %v524
    %v845 = vunpack.c.h.b16 %v524
    %v846 = vunpack.c.l.b16 %v525
    %v847 = vunpack.c.h.b16 %v525
    %v848 = vunpack.c.l.b16 %v526
    %v849 = vunpack.c.h.b16 %v526
    %v850 = vunpack.c.l.b16 %v527
    %v851 = vunpack.c.h.b16 %v527
    %v852 = vunpack.c.l.b16 %v528
    %v853 = vunpack.c.h.b16 %v528
    %v854 = vunpack.c.l.b16 %v529
    %v855 = vunpack.c.h.b16 %v529
    %v856 = vunpack.c.l.b16 %v530
    %v857 = vunpack.c.h.b16 %v530
    %v858 = vunpack.c.l.b16 %v531
    %v859 = vunpack.c.h.b16 %v531
    %v860 = vunpack.c.l.b16 %v532
    %v861 = vunpack.c.h.b16 %v532
    %v862 = vunpack.c.l.b16 %v533
    %v863 = vunpack.c.h.b16 %v533
    %v864 = vunpack.c.l.b16 %v534
    %v865 = vunpack.c.h.b16 %v534
    %v866 = vunpack.c.l.b16 %v535
    %v867 = vunpack.c.h.b16 %v535
    %v868 = vunpack.c.l.b16 %v536
    %v869 = vunpack.c.h.b16 %v536
    %v870 = vunpack.c.l.b16 %v537
    %v871 = vunpack.c.h.b16 %v537
    %v872 = vunpack.c.l.b16 %v538
    %v873 = vunpack.c.h.b16 %v538
    %v874 = vunpack.c.l.b16 %v539
    %v875 = vunpack.c.h.b16 %v539
    %v876 = vunpack.c.l.b16 %v540
    %v877 = vunpack.c.h.b16 %v540
    %v878 = vunpack.c.l.b16 %v541
    %v879 = vunpack.c.h.b16 %v541
    %v880 = vunpack.c.l.b16 %v542
    %v881 = vunpack.c.h.b16 %v542
    %v882 = vunpack.c.l.b16 %v543
    %v883 = vunpack.c.h.b16 %v543
    %v884 = vunpack.c.l.b16 %v544
    %v885 = vunpack.c.h.b16 %v544
    %v886 = vunpack.c.l.b16 %v545
    %v887 = vunpack.c.h.b16 %v545
    %v888 = vunpack.c.l.b16 %v546
    %v889 = vunpack.c.h.b16 %v546
    %v890 = vunpack.c.l.b16 %v547
    %v891 = vunpack.c.h.b16 %v547
    %v892 = vunpack.c.l.b16 %v548
    %v893 = vunpack.c.h.b16 %v548
    %v894 = vunpack.c.l.b16 %v549
    %v895 = vunpack.c.h.b16 %v549
    %v896 = vunpack.c.l.b16 %v550
    %v897 = vunpack.c.h.b16 %v550
    %v898 = vunpack.c.l.b16 %v551
    %v899 = vunpack.c.h.b16 %v551
    %v900 = vunpack.c.l.b16 %v552
    %v901 = vunpack.c.h.b16 %v552
    %v902 = vunpack.c.l.b16 %v553
    %v903 = vunpack.c.h.b16 %v553
    %v904 = vunpack.c.l.b16 %v554
    %v905 = vunpack.c.h.b16 %v554
    %v906 = vunpack.c.l.b16 %v555
    %v907 = vunpack.c.h.b16 %v555
    %v908 = vunpack.c.l.b16 %v556
    %v909 = vunpack.c.h.b16 %v556
    %v910 = vunpack.c.l.b16 %v557
    %v911 = vunpack.c.h.b16 %v557
    %v912 = vunpack.c.l.b16 %v558
    %v913 = vunpack.c.h.b16 %v558
    %v914 = vunpack.c.l.b16 %v559
    %v915 = vunpack.c.h.b16 %v559
    %v916 = vunpack.c.l.b16 %v560
    %v917 = vunpack.c.h.b16 %v560
    %v918 = vunpack.c.l.b16 %v561
    %v919 = vunpack.c.h.b16 %v561
    %v920 = vunpack.c.l.b16 %v562
    %v921 = vunpack.c.h.b16 %v562
    %v922 = vunpack.c.l.b16 %v563
    %v923 = vunpack.c.h.b16 %v563
    %v924 = vunpack.c.l.b16 %v564
    %v925 = vunpack.c.h.b16 %v564
    %v926 = vunpack.c.l.b16 %v565
    %v927 = vunpack.c.h.b16 %v565
    %v928 = vunpack.c.l.b16 %v566
    %v929 = vunpack.c.h.b16 %v566
    %v930 = vunpack.c.l.b16 %v567
    %v931 = vunpack.c.h.b16 %v567
    %v932 = vunpack.c.l.b16 %v568
    %v933 = vunpack.c.h.b16 %v568
    %v934 = vunpack.c.l.b16 %v569
    %v935 = vunpack.c.h.b16 %v569
    %v936 = vunpack.c.l.b16 %v570
    %v937 = vunpack.c.h.b16 %v570
    %v938 = vunpack.c.l.b16 %v571
    %v939 = vunpack.c.h.b16 %v571
    %v940 = vunpack.c.l.b16 %v572
    %v941 = vunpack.c.h.b16 %v572
    %v942 = vunpack.c.l.b16 %v573
    %v943 = vunpack.c.h.b16 %v573
    %v944 = vunpack.c.l.b16 %v574
    %v945 = vunpack.c.h.b16 %v574
    %v946 = vunpack.c.l.b16 %v575
    %v947 = vunpack.c.h.b16 %v575
    %v948 = vunpack.c.l.b16 %v576
    %v949 = vunpack.c.h.b16 %v576
    %v950 = vunpack.c.l.b16 %v577
    %v951 = vunpack.c.h.b16 %v577
    %v952 = vunpack.c.l.b16 %v578
    %v953 = vunpack.c.h.b16 %v578
    %v954 = vunpack.c.l.b16 %v579
    %v955 = vunpack.c.h.b16 %v579
    %v956 = vunpack.c.l.b16 %v580
    %v957 = vunpack.c.h.b16 %v580
    %v958 = vunpack.c.l.b16 %v581
    %v959 = vunpack.c.h.b16 %v581
    %v960 = vunpack.c.l.b16 %v582
    %v961 = vunpack.c.h.b16 %v582
    %v962 = vunpack.c.l.b16 %v583
    %v963 = vunpack.c.h.b16 %v583
    %v964 = vunpack.c.l.b16 %v584
    %v965 = vunpack.c.h.b16 %v584
    %v966 = vunpack.c.l.b16 %v585
    %v967 = vunpack.c.h.b16 %v585
    %v968 = vunpack.c.l.b16 %v586
    %v969 = vunpack.c.h.b16 %v586
    %v970 = vunpack.c.l.b16 %v587
    %v971 = vunpack.c.h.b16 %v587
    %v972 = vunpack.c.l.b16 %v588
    %v973 = vunpack.c.h.b16 %v588
    %v974 = vunpack.c.l.b16 %v589
    %v975 = vunpack.c.h.b16 %v589
    %v976 = vunpack.c.l.b16 %v590
    %v977 = vunpack.c.h.b16 %v590
    %v978 = vunpack.c.l.b16 %v591
    %v979 = vunpack.c.h.b16 %v591
    %v980 = vunpack.c.l.b16 %v592
    %v981 = vunpack.c.h.b16 %v592
    %v982 = vunpack.c.l.b16 %v593
    %v983 = vunpack.c.h.b16 %v593
    %v984 = vunpack.c.l.b16 %v594
    %v985 = vunpack.c.h.b16 %v594
    %v986 = vunpack.c.l.b16 %v595
    %v987 = vunpack.c.h.b16 %v595
    %v988 = vunpack.c.l.b16 %v596
    %v989 = vunpack.c.h.b16 %v596
    %v990 = vunpack.c.l.b16 %v597
    %v991 = vunpack.c.h.b16 %v597
    %v992 = vpack.c.b16 %v740, %v736
    %v993 = vpack.c.b16 %v741, %v737
    %v994 = vpack.c.b16 %v742, %v738
    %v995 = vpack.c.b16 %v743, %v739
    %v996 = vpack.c.b16 %v748, %v744
    %v997 = vpack.c.b16 %v749, %v745
    %v998 = vpack.c.b16 %v750, %v746
    %v999 = vpack.c.b16 %v751, %v747
    %v1000 = vpack.c.b16 %v756, %v752
    %v1001 = vpack.c.b16 %v757, %v753
    %v1002 = vpack.c.b16 %v758, %v754
    %v1003 = vpack.c.b16 %v759, %v755
    %v1004 = vpack.c.b16 %v764, %v760
    %v1005 = vpack.c.b16 %v765, %v761
    %v1006 = vpack.c.b16 %v766, %v762
    %v1007 = vpack.c.b16 %v767, %v763
    %v1008 = vpack.c.b16 %v772, %v768
    %v1009 = vpack.c.b16 %v773, %v769
    %v1010 = vpack.c.b16 %v774, %v770
    %v1011 = vpack.c.b16 %v775, %v771
    %v1012 = vpack.c.b16 %v780, %v776
    %v1013 = vpack.c.b16 %v781, %v777
    %v1014 = vpack.c.b16 %v782, %v778
    %v1015 = vpack.c.b16 %v783, %v779
    %v1016 = vpack.c.b16 %v788, %v784
    %v1017 = vpack.c.b16 %v789, %v785
    %v1018 = vpack.c.b16 %v790, %v786
    %v1019 = vpack.c.b16 %v791, %v787
    %v1020 = vpack.c.b16 %v796, %v792
    %v1021 = vpack.c.b16 %v797, %v793
    %v1022 = vpack.c.b16 %v798, %v794
    %v1023 = vpack.c.b16 %v799, %v795
    %v1024 = vpack.c.b16 %v804, %v800
    %v1025 = vpack.c.b16 %v805, %v801
    %v1026 = vpack.c.b16 %v806, %v802
    %v1027 = vpack.c.b16 %v807, %v803
    %v1028 = vpack.c.b16 %v812, %v808
    %v1029 = vpack.c.b16 %v813, %v809
    %v1030 = vpack.c.b16 %v814, %v810
    %v1031 = vpack.c.b16 %v815, %v811
    %v1032 = vpack.c.b16 %v820, %v816
    %v1033 = vpack.c.b16 %v821, %v817
    %v1034 = vpack.c.b16 %v822, %v818
    %v1035 = vpack.c.b16 %v823, %v819
    %v1036 = vpack.c.b16 %v828, %v824
    %v1037 = vpack.c.b16 %v829, %v825
    %v1038 = vpack.c.b16 %v830, %v826
    %v1039 = vpack.c.b16 %v831, %v827
    %v1040 = vpack.c.b16 %v836, %v832
    %v1041 = vpack.c.b16 %v837, %v833
    %v1042 = vpack.c.b16 %v838, %v834
    %v1043 = vpack.c.b16 %v839, %v835
    %v1044 = vpack.c.b16 %v844, %v840
    %v1045 = vpack.c.b16 %v845, %v841
    %v1046 = vpack.c.b16 %v846, %v842
    %v1047 = vpack.c.b16 %v847, %v843
    %v1048 = vpack.c.b16 %v852, %v848
    %v1049 = vpack.c.b16 %v853, %v849
    %v1050 = vpack.c.b16 %v854, %v850
    %v1051 = vpack.c.b16 %v855, %v851
    %v1052 = vpack.c.b16 %v860, %v856
    %v1053 = vpack.c.b16 %v861, %v857
    %v1054 = vpack.c.b16 %v862, %v858
    %v1055 = vpack.c.b16 %v863, %v859
    %v1056 = vpack.c.b16 %v868, %v864
    %v1057 = vpack.c.b16 %v869, %v865
    %v1058 = vpack.c.b16 %v870, %v866
    %v1059 = vpack.c.b16 %v871, %v867
    %v1060 = vpack.c.b16 %v876, %v872
    %v1061 = vpack.c.b16 %v877, %v873
    %v1062 = vpack.c.b16 %v878, %v874
    %v1063 = vpack.c.b16 %v879, %v875
    %v1064 = vpack.c.b16 %v884, %v880
    %v1065 = vpack.c.b16 %v885, %v881
    %v1066 = vpack.c.b16 %v886, %v882
    %v1067 = vpack.c.b16 %v887, %v883
    %v1068 = vpack.c.b16 %v892, %v888
    %v1069 = vpack.c.b16 %v893, %v889
    %v1070 = vpack.c.b16 %v894, %v890
    %v1071 = vpack.c.b16 %v895, %v891
    %v1072 = vpack.c.b16 %v900, %v896
    %v1073 = vpack.c.b16 %v901, %v897
    %v1074 = vpack.c.b16 %v902, %v898
    %v1075 = vpack.c.b16 %v903, %v899
    %v1076 = vpack.c.b16 %v908, %v904
    %v1077 = vpack.c.b16 %v909, %v905
    %v1078 = vpack.c.b16 %v910, %v906
    %v1079 = vpack.c.b16 %v911, %v907
    %v1080 = vpack.c.b16 %v916, %v912
    %v1081 = vpack.c.b16 %v917, %v913
    %v1082 = vpack.c.b16 %v918, %v914
    %v1083 = vpack.c.b16 %v919, %v915
    %v1084 = vpack.c.b16 %v924, %v920
    %v1085 = vpack.c.b16 %v925, %v921
    %v1086 = vpack.c.b16 %v926, %v922
    %v1087 = vpack.c.b16 %v927, %v923
    %v1088 = vpack.c.b16 %v932, %v928
    %v1089 = vpack.c.b16 %v933, %v929
    %v1090 = vpack.c.b16 %v934, %v930
    %v1091 = vpack.c.b16 %v935, %v931
    %v1092 = vpack.c.b16 %v940, %v936
    %v1093 = vpack.c.b16 %v941, %v937
    %v1094 = vpack.c.b16 %v942, %v938
    %v1095 = vpack.c.b16 %v943, %v939
    %v1096 = vpack.c.b16 %v948, %v944
    %v1097 = vpack.c.b16 %v949, %v945
    %v1098 = vpack.c.b16 %v950, %v946
    %v1099 = vpack.c.b16 %v951, %v947
    %v1100 = vpack.c.b16 %v956, %v952
    %v1101 = vpack.c.b16 %v957, %v953
    %v1102 = vpack.c.b16 %v958, %v954
    %v1103 = vpack.c.b16 %v959, %v955
    %v1104 = vpack.c.b16 %v964, %v960
    %v1105 = vpack.c.b16 %v965, %v961
    %v1106 = vpack.c.b16 %v966, %v962
    %v1107 = vpack.c.b16 %v967, %v963
    %v1108 = vpack.c.b16 %v972, %v968
    %v1109 = vpack.c.b16 %v973, %v969
    %v1110 = vpack.c.b16 %v974, %v970
    %v1111 = vpack.c.b16 %v975, %v971
    %v1112 = vpack.c.b16 %v980, %v976
    %v1113 = vpack.c.b16 %v981, %v977
    %v1114 = vpack.c.b16 %v982, %v978
    %v1115 = vpack.c.b16 %v983, %v979
    %v1116 = vpack.c.b16 %v988, %v984
    %v1117 = vpack.c.b16 %v989, %v985
    %v1118 = vpack.c.b16 %v990, %v986
    %v1119 = vpack.c.b16 %v991, %v987
    %1248 = vmatpush.bf16.msra.mxu0 %v1020
    %1249 = vmatpush.bf16.msra.mxu0 %v1016
    %1250 = vmatpush.bf16.msra.mxu0 %v1012
    %1251 = vmatpush.bf16.msra.mxu0 %v1008
    %1252 = vmatpush.bf16.msra.mxu0 %v1004
    %1253 = vmatpush.bf16.msra.mxu0 %v1000
    %1254 = vmatpush.bf16.msra.mxu0 %v996
    %1255 = vmatpush.bf16.msra.mxu0 %v992
    %1256 = vmatmul.bf16.gmra.mxu0 %v466
    %v1257 = vpop.f32.mrf.mxu0
    %v1258 = vadd.f32 %v600, %v1257
    %v1259 = vpop.f32.mrf.mxu0
    %1260 = vdwg.mxu0
    %1261 = vmatpush.bf16.msra.mxu0 %v1052
    %1262 = vmatpush.bf16.msra.mxu0 %v1048
    %1263 = vmatpush.bf16.msra.mxu0 %v1044
    %1264 = vmatpush.bf16.msra.mxu0 %v1040
    %1265 = vmatpush.bf16.msra.mxu0 %v1036
    %1266 = vmatpush.bf16.msra.mxu0 %v1032
    %1267 = vmatpush.bf16.msra.mxu0 %v1028
    %1268 = vmatpush.bf16.msra.mxu0 %v1024
    %1269 = vmatmul.bf16.gmra.mxu0 %v467
    %v1270 = vpop.f32.mrf.mxu0
    %v1271 = vadd.f32 %v1258, %v1270
    %v1272 = vpop.f32.mrf.mxu0
    %1273 = vdwg.mxu0
    %1274 = vmatpush.bf16.msra.mxu0 %v1084
    %1275 = vmatpush.bf16.msra.mxu0 %v1080
    %1276 = vmatpush.bf16.msra.mxu0 %v1076
    %1277 = vmatpush.bf16.msra.mxu0 %v1072
    %1278 = vmatpush.bf16.msra.mxu0 %v1068
    %1279 = vmatpush.bf16.msra.mxu0 %v1064
    %1280 = vmatpush.bf16.msra.mxu0 %v1060
    %1281 = vmatpush.bf16.msra.mxu0 %v1056
    %1282 = vmatmul.bf16.gmra.mxu0 %v468
    %v1283 = vpop.f32.mrf.mxu0
    %v1284 = vadd.f32 %v1271, %v1283
    %v1285 = vpop.f32.mrf.mxu0
    %1286 = vdwg.mxu0
    %1287 = vmatpush.bf16.msra.mxu0 %v1116
    %1288 = vmatpush.bf16.msra.mxu0 %v1112
    %1289 = vmatpush.bf16.msra.mxu0 %v1108
    %1290 = vmatpush.bf16.msra.mxu0 %v1104
    %1291 = vmatpush.bf16.msra.mxu0 %v1100
    %1292 = vmatpush.bf16.msra.mxu0 %v1096
    %1293 = vmatpush.bf16.msra.mxu0 %v1092
    %1294 = vmatpush.bf16.msra.mxu0 %v1088
    %1295 = vmatmul.bf16.gmra.mxu0 %v469
    %v1296 = vpop.f32.mrf.mxu0
    %v1297 = vadd.f32 %v1284, %v1296
    %v1298 = vpop.f32.mrf.mxu0
    %1299 = vdwg.mxu0
    %1300 = vmatpush.bf16.msra.mxu0 %v1021
    %1301 = vmatpush.bf16.msra.mxu0 %v1017
    %1302 = vmatpush.bf16.msra.mxu0 %v1013
    %1303 = vmatpush.bf16.msra.mxu0 %v1009
    %1304 = vmatpush.bf16.msra.mxu0 %v1005
    %1305 = vmatpush.bf16.msra.mxu0 %v1001
    %1306 = vmatpush.bf16.msra.mxu0 %v997
    %1307 = vmatpush.bf16.msra.mxu0 %v993
    %1308 = vmatmul.bf16.gmra.mxu0 %v466
    %v1309 = vpop.f32.mrf.mxu0
    %v1310 = vadd.f32 %v601, %v1309
    %v1311 = vpop.f32.mrf.mxu0
    %1312 = vdwg.mxu0
    %1313 = vmatpush.bf16.msra.mxu0 %v1053
    %1314 = vmatpush.bf16.msra.mxu0 %v1049
    %1315 = vmatpush.bf16.msra.mxu0 %v1045
    %1316 = vmatpush.bf16.msra.mxu0 %v1041
    %1317 = vmatpush.bf16.msra.mxu0 %v1037
    %1318 = vmatpush.bf16.msra.mxu0 %v1033
    %1319 = vmatpush.bf16.msra.mxu0 %v1029
    %1320 = vmatpush.bf16.msra.mxu0 %v1025
    %1321 = vmatmul.bf16.gmra.mxu0 %v467
    %v1322 = vpop.f32.mrf.mxu0
    %v1323 = vadd.f32 %v1310, %v1322
    %v1324 = vpop.f32.mrf.mxu0
    %1325 = vdwg.mxu0
    %1326 = vmatpush.bf16.msra.mxu0 %v1085
    %1327 = vmatpush.bf16.msra.mxu0 %v1081
    %1328 = vmatpush.bf16.msra.mxu0 %v1077
    %1329 = vmatpush.bf16.msra.mxu0 %v1073
    %1330 = vmatpush.bf16.msra.mxu0 %v1069
    %1331 = vmatpush.bf16.msra.mxu0 %v1065
    %1332 = vmatpush.bf16.msra.mxu0 %v1061
    %1333 = vmatpush.bf16.msra.mxu0 %v1057
    %1334 = vmatmul.bf16.gmra.mxu0 %v468
    %v1335 = vpop.f32.mrf.mxu0
    %v1336 = vadd.f32 %v1323, %v1335
    %v1337 = vpop.f32.mrf.mxu0
    %1338 = vdwg.mxu0
    %1339 = vmatpush.bf16.msra.mxu0 %v1117
    %1340 = vmatpush.bf16.msra.mxu0 %v1113
    %1341 = vmatpush.bf16.msra.mxu0 %v1109
    %1342 = vmatpush.bf16.msra.mxu0 %v1105
    %1343 = vmatpush.bf16.msra.mxu0 %v1101
    %1344 = vmatpush.bf16.msra.mxu0 %v1097
    %1345 = vmatpush.bf16.msra.mxu0 %v1093
    %1346 = vmatpush.bf16.msra.mxu0 %v1089
    %1347 = vmatmul.bf16.gmra.mxu0 %v469
    %v1348 = vpop.f32.mrf.mxu0
    %v1349 = vadd.f32 %v1336, %v1348
    %v1350 = vpop.f32.mrf.mxu0
    %1351 = vdwg.mxu0
    %1352 = vmatpush.bf16.msra.mxu0 %v1022
    %1353 = vmatpush.bf16.msra.mxu0 %v1018
    %1354 = vmatpush.bf16.msra.mxu0 %v1014
    %1355 = vmatpush.bf16.msra.mxu0 %v1010
    %1356 = vmatpush.bf16.msra.mxu0 %v1006
    %1357 = vmatpush.bf16.msra.mxu0 %v1002
    %1358 = vmatpush.bf16.msra.mxu0 %v998
    %1359 = vmatpush.bf16.msra.mxu0 %v994
    %1360 = vmatmul.bf16.gmra.mxu0 %v466
    %v1361 = vpop.f32.mrf.mxu0
    %v1362 = vadd.f32 %v602, %v1361
    %v1363 = vpop.f32.mrf.mxu0
    %1364 = vdwg.mxu0
    %1365 = vmatpush.bf16.msra.mxu0 %v1054
    %1366 = vmatpush.bf16.msra.mxu0 %v1050
    %1367 = vmatpush.bf16.msra.mxu0 %v1046
    %1368 = vmatpush.bf16.msra.mxu0 %v1042
    %1369 = vmatpush.bf16.msra.mxu0 %v1038
    %1370 = vmatpush.bf16.msra.mxu0 %v1034
    %1371 = vmatpush.bf16.msra.mxu0 %v1030
    %1372 = vmatpush.bf16.msra.mxu0 %v1026
    %1373 = vmatmul.bf16.gmra.mxu0 %v467
    %v1374 = vpop.f32.mrf.mxu0
    %v1375 = vadd.f32 %v1362, %v1374
    %v1376 = vpop.f32.mrf.mxu0
    %1377 = vdwg.mxu0
    %1378 = vmatpush.bf16.msra.mxu0 %v1086
    %1379 = vmatpush.bf16.msra.mxu0 %v1082
    %1380 = vmatpush.bf16.msra.mxu0 %v1078
    %1381 = vmatpush.bf16.msra.mxu0 %v1074
    %1382 = vmatpush.bf16.msra.mxu0 %v1070
    %1383 = vmatpush.bf16.msra.mxu0 %v1066
    %1384 = vmatpush.bf16.msra.mxu0 %v1062
    %1385 = vmatpush.bf16.msra.mxu0 %v1058
    %1386 = vmatmul.bf16.gmra.mxu0 %v468
    %v1387 = vpop.f32.mrf.mxu0
    %v1388 = vadd.f32 %v1375, %v1387
    %v1389 = vpop.f32.mrf.mxu0
    %1390 = vdwg.mxu0
    %1391 = vmatpush.bf16.msra.mxu0 %v1118
    %1392 = vmatpush.bf16.msra.mxu0 %v1114
    %1393 = vmatpush.bf16.msra.mxu0 %v1110
    %1394 = vmatpush.bf16.msra.mxu0 %v1106
    %1395 = vmatpush.bf16.msra.mxu0 %v1102
    %1396 = vmatpush.bf16.msra.mxu0 %v1098
    %1397 = vmatpush.bf16.msra.mxu0 %v1094
    %1398 = vmatpush.bf16.msra.mxu0 %v1090
    %1399 = vmatmul.bf16.gmra.mxu0 %v469
    %v1400 = vpop.f32.mrf.mxu0
    %v1401 = vadd.f32 %v1388, %v1400
    %v1402 = vpop.f32.mrf.mxu0
    %1403 = vdwg.mxu0
    %1404 = vmatpush.bf16.msra.mxu0 %v1023
    %1405 = vmatpush.bf16.msra.mxu0 %v1019
    %1406 = vmatpush.bf16.msra.mxu0 %v1015
    %1407 = vmatpush.bf16.msra.mxu0 %v1011
    %1408 = vmatpush.bf16.msra.mxu0 %v1007
    %1409 = vmatpush.bf16.msra.mxu0 %v1003
    %1410 = vmatpush.bf16.msra.mxu0 %v999
    %1411 = vmatpush.bf16.msra.mxu0 %v995
    %1412 = vmatmul.bf16.gmra.mxu0 %v466
    %v1413 = vpop.f32.mrf.mxu0
    %v1414 = vadd.f32 %v603, %v1413
    %v1415 = vpop.f32.mrf.mxu0
    %1416 = vdwg.mxu0
    %1417 = vmatpush.bf16.msra.mxu0 %v1055
    %1418 = vmatpush.bf16.msra.mxu0 %v1051
    %1419 = vmatpush.bf16.msra.mxu0 %v1047
    %1420 = vmatpush.bf16.msra.mxu0 %v1043
    %1421 = vmatpush.bf16.msra.mxu0 %v1039
    %1422 = vmatpush.bf16.msra.mxu0 %v1035
    %1423 = vmatpush.bf16.msra.mxu0 %v1031
    %1424 = vmatpush.bf16.msra.mxu0 %v1027
    %1425 = vmatmul.bf16.gmra.mxu0 %v467
    %v1426 = vpop.f32.mrf.mxu0
    %v1427 = vadd.f32 %v1414, %v1426
    %v1428 = vpop.f32.mrf.mxu0
    %1429 = vdwg.mxu0
    %1430 = vmatpush.bf16.msra.mxu0 %v1087
    %1431 = vmatpush.bf16.msra.mxu0 %v1083
    %1432 = vmatpush.bf16.msra.mxu0 %v1079
    %1433 = vmatpush.bf16.msra.mxu0 %v1075
    %1434 = vmatpush.bf16.msra.mxu0 %v1071
    %1435 = vmatpush.bf16.msra.mxu0 %v1067
    %1436 = vmatpush.bf16.msra.mxu0 %v1063
    %1437 = vmatpush.bf16.msra.mxu0 %v1059
    %1438 = vmatmul.bf16.gmra.mxu0 %v468
    %v1439 = vpop.f32.mrf.mxu0
    %v1440 = vadd.f32 %v1427, %v1439
    %v1441 = vpop.f32.mrf.mxu0
    %1442 = vdwg.mxu0
    %1443 = vmatpush.bf16.msra.mxu0 %v1119
    %1444 = vmatpush.bf16.msra.mxu0 %v1115
    %1445 = vmatpush.bf16.msra.mxu0 %v1111
    %1446 = vmatpush.bf16.msra.mxu0 %v1107
    %1447 = vmatpush.bf16.msra.mxu0 %v1103
    %1448 = vmatpush.bf16.msra.mxu0 %v1099
    %1449 = vmatpush.bf16.msra.mxu0 %v1095
    %1450 = vmatpush.bf16.msra.mxu0 %v1091
    %1451 = vmatmul.bf16.gmra.mxu0 %v469
    %v1452 = vpop.f32.mrf.mxu0
    %v1453 = vadd.f32 %v1440, %v1452
    %v1454 = vpop.f32.mrf.mxu0
    %1455 = vdwg.mxu0
    %1456 = vst [vmem:[#allocation13] sm:$0xff] %v1297
    %1457 = vst [vmem:[#allocation13 + $0x8] sm:$0xff] %v1349
    %1458 = vst [vmem:[#allocation13 + $0x10] sm:$0xff] %v1401
    %1459 = vst [vmem:[#allocation13 + $0x18] sm:$0xff] %v1453
    // Predicated region
    $region46: #{tpu_custom_call.1} parent=1 // pred_check
      _
    $region47: #{tpu_custom_call.1} parent=1 // pred_check_branch
      %1461 = sbr.rel (0) target = $region49
    $region48: #{tpu_custom_call.1} parent=1 // pred_region
      %1463 = vsyncadd [#allocation5], 0
      %s1465 = sshll.u32 [#allocation13], 4
      %s1466 = int_to_ptr.vmem [resolvable:$true] %s1465
      %s1467 = sshll.u32 %s6, 4
      %s1468 = int_to_ptr.hbm [resolvable:$true] %s1467
      %1470 = dma.vmem_to_hbm [thread:$0]  %s1466, 512, %s1468, [#allocation5]
    $region49: #{tpu_custom_call.1} parent=1 // pred_fallthru
      _
    // Predicated region
    $region50: #{tpu_custom_call.1} parent=1 // pred_check
      _
    $region51: #{tpu_custom_call.1} parent=1 // pred_check_branch
      %1472 = sbr.rel (0) target = $region53
    $region52: #{tpu_custom_call.1} parent=1 // pred_region
      %1474 = dma.done [#allocation5], 512
    $region53: #{tpu_custom_call.1} parent=1 // pred_fallthru
      _
    %1475 = vsyncpa [#allocation4], 1
    %1476 = vsyncpa [#allocation9], 1
    %1477 = vsyncpa [#allocation12], 1
    %1478 = vsyncpa [#allocation5], 1
    %1479 = vsyncpa [#allocation6], 1

</llo_original>
